<compile_context>
chip_gen: v5e
topology: v5e:2x2
jax: 0.10.0
libtpu: 0.0.40
codegen_flags: <defaults>
</compile_context>

<pallas_src>
import jax
import jax.numpy as jnp
from jax.experimental import pallas as pl
from jax.experimental.pallas import tpu as pltpu


def _identity_kernel(x_ref, o_ref):
    # Pure pass-through: full-tile VMEM load + store.
    o_ref[...] = x_ref[...]


def _choose_2d_shape(n: int, c: int, h: int, w: int) -> tuple[int, int]:
    """Pick a (rows, cols) flattening with a lane-dense (128-multiple) cols."""
    total = n * c * h * w
    hw = h * w
    if hw % 128 == 0:
        return n * c, hw
    if total % 128 == 0:
        # Flatten fully; grow cols in powers of two while it divides total.
        cols = 128
        while cols * 2 <= 4096 and total % (cols * 2) == 0:
            cols *= 2
        return total // cols, cols
    # Fallback: full-extent column block (compiles fine, masked stores only
    # for genuinely odd spatial sizes).
    return n * c, hw


def custom_model_forward(x: jax.Array) -> jax.Array:
    """Identity forward for CustomModel, run through a Pallas TPU kernel.

    x: [N, C, H, W]  (any float dtype)
    returns: same shape/dtype as x (output aliases the input buffer).
    """
    n, c, h, w = x.shape
    rows, cols = _choose_2d_shape(n, c, h, w)
    x2d = x.reshape(rows, cols)

    dtype_bytes = jnp.dtype(x2d.dtype).itemsize

    # Largest row block that keeps each tile under ~2 MiB.  With in + out
    # buffers and 2-deep double buffering that is ~8 MiB resident, which fits
    # the default scoped VMEM on every generation (v5e 16 MiB, v6e/v7x 32 MiB)
    # while being far past the ~85%-of-roofline tile size for a memcpy.
    target_tile_bytes = 2 << 20
    rows_by_budget = max(8, (target_tile_bytes // max(1, cols * dtype_bytes)))
    block_rows = min(rows, rows_by_budget)
    if block_rows != rows:
        # Keep the (8, 128) tiling constraint: block rows must be a multiple
        # of 8 unless the block spans the full row extent.
        block_rows = max(8, (block_rows // 8) * 8)

    grid = (pl.cdiv(rows, block_rows),)

    out2d = pl.pallas_call(
        _identity_kernel,
        out_shape=jax.ShapeDtypeStruct((rows, cols), x2d.dtype),
        grid_spec=pltpu.PrefetchScalarGridSpec(
            num_scalar_prefetch=0,
            grid=grid,
            in_specs=[pl.BlockSpec((block_rows, cols), lambda i: (i, 0))],
            out_specs=pl.BlockSpec((block_rows, cols), lambda i: (i, 0)),
        ),
        # Output aliases the input: no new HBM allocation for the result.
        input_output_aliases={0: 0},
        compiler_params=pltpu.CompilerParams(
            # Row axis is embarrassingly parallel -> shard across TCs on v7x.
            dimension_semantics=("parallel",),
        ),
    )(x2d)

    return out2d.reshape(n, c, h, w)


if __name__ == "__main__":
    key = jax.random.PRNGKey(0)
    # Small NCHW input consistent with a conv-style model: batch=2, channels=4,
    # spatial=16x16 (H*W = 256, lane-dense).
    x = jax.random.normal(key, (2, 4, 16, 16), dtype=jnp.float32)

    y = custom_model_forward(x)
    jax.block_until_ready(y)

    # Identity semantics: exact bitwise equality expected.
    assert y.shape == x.shape and y.dtype == x.dtype
    assert bool(jnp.array_equal(y, x)), "identity kernel mismatch"

    print("KERNEL_OK")
</pallas_src>

<mosaic_0001>
module attributes {stable_mosaic.version = 11 : i64} {
  func.func @_identity_kernel(%arg0: i32, %arg1: memref<8x256xf32, #tpu.memory_space<vmem>>, %arg2: memref<8x256xf32, #tpu.memory_space<vmem>>) attributes {dimension_semantics = [#tpu.dimension_semantics<parallel>], iteration_bounds = array<i64: 1>, scalar_prefetch = 0 : i64, scratch_operands = 0 : i64, tpu.core_type = #tpu.core_type<tc>, window_params = [{transform_indices = @transform_0, window_bounds = array<i64: 8, 256>}, {transform_indices = @transform_1, window_bounds = array<i64: 8, 256>}]} {
    %c0 = arith.constant 0 : index
    %c0_0 = arith.constant 0 : index
    %0 = vector.load %arg1[%c0, %c0_0] : memref<8x256xf32, #tpu.memory_space<vmem>>, vector<8x256xf32>
    %c0_1 = arith.constant 0 : index
    %c0_2 = arith.constant 0 : index
    %1 = vector.load %arg2[%c0_1, %c0_2] : memref<8x256xf32, #tpu.memory_space<vmem>>, vector<8x256xf32>
    tpu.vector_store %arg2[%c0_1, %c0_2], %0 {strides = array<i32>} : memref<8x256xf32, #tpu.memory_space<vmem>>, vector<8x256xf32>,
    return
  }
  func.func @transform_0(%arg0: i32) -> (i32, i32) {
    %c0_i32 = arith.constant 0 : i32
    %c0_i32_0 = arith.constant 0 : i32
    return %arg0, %c0_i32 : i32, i32
  }
  func.func @transform_1(%arg0: i32) -> (i32, i32) {
    %c0_i32 = arith.constant 0 : i32
    %c0_i32_0 = arith.constant 0 : i32
    return %arg0, %c0_i32 : i32, i32
  }
}

</mosaic_0001>

<llo_original>
// kernel: tpu_custom_call.1
$region0: #{tpu_custom_call.1}
  #allocation0 [shape = 'u32[]', space=smem, size = 0x4, offset = 0x4, fixed_abs, tag = 'smem constant byte address 0x4 - core index']
  #allocation1 [shape = 'u32[72,128]{1,0:T(1,128)}', space=vmem, size = 0x9000, scoped, tag = 'internal scratch']
  %s0 = inlined_call_operand.hbm [shape: f32[8,256], index: 0, kind: input, shape index: {}, may-alias: {0,1}]
  %s1 = inlined_call_operand.hbm [shape: f32[8,256], index: 1, kind: output, shape index: {}, may-alias: {0,1}]
  %s2 = sld [smem:[#allocation0]]
  $region18: #{tpu_custom_call.1} parent=0
    _
  %s4 = ssub.s32 1, %s2
  %s5 = scalar_select 0, %s4, %s2
  $region1: #{tpu_custom_call.1} parent=0
    #allocation2 [shape = 'u8[8192]{0}', space=vmem, size = 0x2000, scoped, tag = 'input window, operand 0, single buffered']
    #allocation3 [shape = 's32[1]{0}', space=sflag, size = 0x4, scoped, tag = 'scoped memory for tpu_custom_call.1']
    #allocation4 [shape = 's32[1]{0}', space=sflag, size = 0x4, scoped, tag = 'scoped memory for tpu_custom_call.1']
    #allocation5 [shape = 'u8[8192]{0}', space=vmem, size = 0x2000, scoped, tag = 'output window, operand 0, single buffered']
    %6 = vsyncpa [#allocation3], 0
    %7 = vsyncpa [#allocation4], 0
    // Predicated region
    $region2: #{tpu_custom_call.1} parent=1 // pred_check
      _
    $region3: #{tpu_custom_call.1} parent=1 // pred_check_branch
      %9 = sbr.rel (0) target = $region5
    $region4: #{tpu_custom_call.1} parent=1 // pred_region
      %11 = vsyncadd [#allocation3], 0
      %s13 = sshll.u32 %s0, 4
      %s14 = int_to_ptr.hbm [resolvable:$true] %s13
      %s15 = sshll.u32 [#allocation2], 4
      %s16 = int_to_ptr.vmem [resolvable:$true] %s15
      %18 = dma.hbm_to_vmem [thread:$0]  %s14, 256, %s16, [#allocation3]
    $region5: #{tpu_custom_call.1} parent=1 // pred_fallthru
      _
    // Predicated region
    $region6: #{tpu_custom_call.1} parent=1 // pred_check
      _
    $region7: #{tpu_custom_call.1} parent=1 // pred_check_branch
      %20 = sbr.rel (0) target = $region9
    $region8: #{tpu_custom_call.1} parent=1 // pred_region
      %22 = dma.done [#allocation3], 256
    $region9: #{tpu_custom_call.1} parent=1 // pred_fallthru
      _
    %v23 = vld [vmem:[#allocation2] sm:$0xff]
    %v24 = vld [vmem:[#allocation2 + $0x8] sm:$0xff]
    %25 = vst [vmem:[#allocation5] sm:$0xff] %v23
    %26 = vst [vmem:[#allocation5 + $0x8] sm:$0xff] %v24
    // Predicated region
    $region10: #{tpu_custom_call.1} parent=1 // pred_check
      _
    $region11: #{tpu_custom_call.1} parent=1 // pred_check_branch
      %28 = sbr.rel (0) target = $region13
    $region12: #{tpu_custom_call.1} parent=1 // pred_region
      %30 = vsyncadd [#allocation4], 0
      %s32 = sshll.u32 [#allocation5], 4
      %s33 = int_to_ptr.vmem [resolvable:$true] %s32
      %s34 = sshll.u32 %s1, 4
      %s35 = int_to_ptr.hbm [resolvable:$true] %s34
      %37 = dma.vmem_to_hbm [thread:$0]  %s33, 256, %s35, [#allocation4]
    $region13: #{tpu_custom_call.1} parent=1 // pred_fallthru
      _
    // Predicated region
    $region14: #{tpu_custom_call.1} parent=1 // pred_check
      _
    $region15: #{tpu_custom_call.1} parent=1 // pred_check_branch
      %39 = sbr.rel (0) target = $region17
    $region16: #{tpu_custom_call.1} parent=1 // pred_region
      %41 = dma.done [#allocation4], 256
    $region17: #{tpu_custom_call.1} parent=1 // pred_fallthru
      _
    %42 = vsyncpa [#allocation3], 1
    %43 = vsyncpa [#allocation4], 1

</llo_original>
